<compile_context>
chip_gen: v7x
topology: tpu7x:2x2x1
jax: 0.10.0
libtpu: 0.0.40
codegen_flags: <defaults>
</compile_context>

<pallas_src>
import functools

import jax
import jax.numpy as jnp
import numpy as np
from jax.experimental import pallas as pl
from jax.experimental.pallas import tpu as pltpu

# ---- problem sizes (small, consistent with the module) ----
B = 2           # batch
T = 16          # sequence length
C = 4           # c_in
NUM_MIX = 10    # default num_mixtures of the module
PARAM_NUM = 2 + 3 * NUM_MIX           # 32 params per channel
C_OUT = C * PARAM_NUM                 # 128
LANES = 128
LOG_EPS = float(np.log(1e-22))        # torch safe_log clamp: log(1e-22)


# ------------------------------------ Pallas kernel ------------------------------------
def _armc_kernel(z_ref, w2_ref, zout_ref, ldj_ref, *, num_mix, n_chan):
    k = num_mix
    c = n_chan
    p = 2 + 3 * k

    z = z_ref[...]                                   # (1, L) lane-dense flattened z
    L = z.shape[1]

    # ---- build the matmul operand in-kernel (no inflated HBM read) ----
    # amat[(cp, c2), l] = z[l + cp - c2] on lanes with (l % C) == c2, else 0.
    # Needed source lanes never wrap because C divides L.  The trailing C rows are the
    # one-hot channel masks, which carry the bias and scaling params through the MXU.
    lane = jax.lax.broadcasted_iota(jnp.int32, (1, L), 1)
    lane_c = lane & (c - 1)                          # channel of each lane (C power of two)
    # pltpu.roll follows np.roll convention: out[l] = x[(l - shift) % L]
    rolled = {d: (z if d % L == 0 else pltpu.roll(z, d % L, axis=1))
              for d in range(-(c - 1), c)}
    rows = []
    for cp in range(c):
        for c2 in range(c):
            rows.append(jnp.where(lane_c == c2, rolled[c2 - cp], 0.0))
    for c2 in range(c):
        rows.append(jnp.where(lane_c == c2, 1.0, 0.0))
    amat = jnp.concatenate(rows, axis=0)             # (C*C + C, L)

    # ---- one MXU matmul: network output + bias + scale / inv-scale slabs ----
    slab = jnp.dot(w2_ref[...], amat,
                   preferred_element_type=jnp.float32)          # (P + 2(1+K), L)

    ls_mls   = slab[0:1 + k, :]                      # [log_s ; mixt_log_s]   (1+K, L)
    t_p      = slab[1 + k:2 + k, :]                  # (1, L)
    log_pi   = slab[2 + k:2 + 2 * k, :]              # (K, L)
    mixt_t   = slab[2 + 2 * k:2 + 3 * k, :]          # (K, L)
    scale_sl = slab[p:p + 1 + k, :]                  # [exp(sf) ; exp(msf)]   (1+K, L)
    inv_sl   = slab[p + 1 + k:p + 2 * (1 + k), :]    # 1/clamp(.,1)           (1+K, L)

    # tanh rescaling of the log-scales, packed into a single contiguous EUP pass
    resc = jnp.tanh(ls_mls * inv_sl) * scale_sl
    log_s      = resc[0:1, :]                        # (1, L)
    mixt_log_s = resc[1:1 + k, :]                    # (K, L)

    # packed exp pass: inverse mixture scales and (max-shifted) mixture weights together
    pi_max = jnp.max(log_pi, axis=0, keepdims=True)
    exp_out = jnp.exp(jnp.concatenate([-mixt_log_s, log_pi - pi_max], axis=0))  # (2K, L)
    inv_scale = exp_out[0:k, :]
    pi_w      = exp_out[k:2 * k, :]

    # logistic mixture in linear domain; sigmoid via tanh (one EUP pass, fully stable)
    a   = (z - mixt_t) * inv_scale                   # (K, L)
    sig = 0.5 * jnp.tanh(0.5 * a) + 0.5              # sigmoid(a)
    pdf = sig * (1.0 - sig) * inv_scale              # logistic pdf

    sum_pi  = jnp.sum(pi_w, axis=0, keepdims=True)
    num_cdf = jnp.sum(pi_w * sig, axis=0, keepdims=True)
    num_pdf = jnp.sum(pi_w * pdf, axis=0, keepdims=True)

    logs = jnp.log(jnp.concatenate([num_cdf, num_pdf, sum_pi], axis=0))   # one log pass
    log_cdf      = jnp.minimum(logs[0:1, :] - logs[2:3, :], 0.0)
    logistic_ldj = logs[1:2, :] - logs[2:3, :]

    # inverse sigmoid (logit) of the CDF, derived stably from log_cdf
    safe_log_cdf = jnp.maximum(log_cdf, LOG_EPS)
    cdf          = jnp.exp(log_cdf)
    log_1m_cdf   = jnp.log(jnp.maximum(1.0 - cdf, 1e-22))
    z_logit  = safe_log_cdf - log_1m_cdf
    mixt_ldj = -safe_log_cdf - log_1m_cdf

    zout_ref[...] = (z_logit + t_p) * jnp.exp(log_s)             # lane-dense (1, L)
    ldj_ref[...]  = log_s + mixt_ldj + logistic_ldj              # lane-dense ldj partial


# ------------------------------------ factory / wrapper ---------------------------------
def make_armc_forward(w, b, scaling_factor, mixture_scaling_factor, num_mix=NUM_MIX):
    """One-time setup: fold weights, bias and scaling params into a single MXU operand.

    Returns forward(z, ldj=None) -> (z_out[B,T,C], ldj[B]) (reverse=False path).
    """
    f32 = jnp.float32
    c = int(scaling_factor.shape[0])
    k = int(num_mix)
    p = 2 + 3 * k
    assert c > 0 and (c & (c - 1)) == 0   # TODO(synk): general C needs lane % C in-kernel

    # slab row order: [log_s, mixt_log_s(K), t, log_pi(K), mixt_t(K)] so the tanh-rescaled
    # rows are contiguous (packed EUP pass).  Pure wrapper-side permutation, one-time cost.
    perm = np.concatenate([[1], np.arange(2 + 2 * k, 2 + 3 * k), [0],
                           np.arange(2, 2 + k), np.arange(2 + k, 2 + 2 * k)])

    # w2[r, cp*C + c2] = w[cp, c2*P + perm[r]];  bias column block bp[r, c2] = b[c2*P + perm[r]]
    w2 = jnp.transpose(w.astype(f32).reshape(c, c, p), (2, 0, 1)).reshape(p, c * c)[perm, :]
    bp = b.astype(f32).reshape(c, p).T[perm, :]                         # (P, C)

    # exp / clamp / reciprocal of the scaling factors, folded into extra matmul rows
    sfe = jnp.exp(scaling_factor.astype(f32))                           # (C,)
    mfe = jnp.exp(mixture_scaling_factor.astype(f32))                   # (C, K)
    scale_rows = jnp.concatenate([sfe[None, :], mfe.T], axis=0)         # (1+K, C)
    inv_rows   = jnp.concatenate([(1.0 / jnp.maximum(sfe, 1.0))[None, :],
                                  (1.0 / jnp.maximum(mfe, 1.0)).T], axis=0)
    zpad = jnp.zeros((1 + k, c * c), f32)
    w2aug = jnp.concatenate([
        jnp.concatenate([w2, bp], axis=1),
        jnp.concatenate([zpad, scale_rows], axis=1),
        jnp.concatenate([zpad, inv_rows], axis=1)], axis=0)             # (P + 2(1+K), C*C + C)

    kern = functools.partial(_armc_kernel, num_mix=k, n_chan=c)
    n_rows = p + 2 * (1 + k)

    @jax.jit
    def forward(z, ldj=None):
        bb, tt, cc = z.shape
        assert cc == c
        nelem = bb * tt * cc
        assert nelem % LANES == 0, "flattened element count must be lane-dense (mult. of 128)"
        z_lane = z.astype(f32).reshape(1, nelem)        # row-major flatten: free

        cost = pl.CostEstimate(
            flops=2 * n_rows * (c * c + c) * nelem + 64 * nelem,
            transcendentals=(4 * k + 7) * nelem,
            bytes_accessed=4 * (3 * nelem + n_rows * (c * c + c)))

        vmem = lambda: pl.BlockSpec(memory_space=pltpu.MemorySpace.VMEM)
        z_out_lane, ldj_lane = pl.pallas_call(
            kern,
            out_shape=(jax.ShapeDtypeStruct((1, nelem), f32),
                       jax.ShapeDtypeStruct((1, nelem), f32)),
            in_specs=[vmem(), vmem()],
            out_specs=(vmem(), vmem()),
            cost_estimate=cost,
        )(z_lane, w2aug)

        z_out = z_out_lane.reshape(bb, tt, cc)
        ldj_mixt = jnp.sum(ldj_lane.reshape(bb, tt * cc), axis=1)
        if ldj is None:
            ldj = jnp.zeros((bb,), f32)
        return z_out, ldj + ldj_mixt

    return forward


# --------------------------------- pure-JAX reference ----------------------------------
def reference_forward(z, w, b, scaling_factor, mixture_scaling_factor):
    """Literal float32 translation of the PyTorch forward math."""
    k = NUM_MIX
    p = 2 + 3 * k
    b_, t_, c = z.shape
    nn_out = jnp.einsum("btc,cd->btd", z, w) + b.reshape(1, 1, -1)
    nn_out = nn_out.reshape(b_, t_, c, p)
    t_par      = nn_out[..., 0]
    log_s      = nn_out[..., 1]
    log_pi     = nn_out[..., 2:2 + k]
    mixt_t     = nn_out[..., 2 + k:2 + 2 * k]
    mixt_log_s = nn_out[..., 2 + 2 * k:2 + 3 * k]

    sfe = jnp.exp(scaling_factor).reshape(1, 1, c)
    log_s = jnp.tanh(log_s / jnp.maximum(sfe, 1.0)) * sfe
    mfe = jnp.exp(mixture_scaling_factor).reshape(1, 1, c, k)
    mixt_log_s = jnp.tanh(mixt_log_s / jnp.maximum(mfe, 1.0)) * mfe

    log_pi_norm = jax.nn.log_softmax(log_pi, axis=-1)
    a = (z[..., None] - mixt_t) * jnp.exp(-mixt_log_s)
    log_cdf = jax.nn.logsumexp(log_pi_norm + jax.nn.log_sigmoid(a), axis=-1)
    cdf = jnp.exp(log_cdf)

    safe_log = lambda x: jnp.log(jnp.maximum(x, 1e-22))
    z_logit = -safe_log(1.0 / cdf - 1.0)                 # inverse sigmoid (logit)
    mixt_ldj = -safe_log(cdf) - safe_log(1.0 - cdf)

    z_out = (z_logit + t_par) * jnp.exp(log_s)
    log_p = a - mixt_log_s - 2.0 * jax.nn.softplus(a)
    logistic_ldj = jax.nn.logsumexp(log_pi_norm + log_p, axis=-1)

    ldj = jnp.sum(log_s + mixt_ldj + logistic_ldj, axis=(1, 2))
    return z_out, ldj


# --------------------------------------- main ------------------------------------------
if __name__ == "__main__":
    key = jax.random.PRNGKey(0)
    kz, kw, kb = jax.random.split(key, 3)

    z = jax.random.normal(kz, (B, T, C), dtype=jnp.float32)
    # deterministic synthetic network weights (model_func stand-in)
    w = jax.random.normal(kw, (C, C_OUT), dtype=jnp.float32) * 0.2
    b = jax.random.normal(kb, (C_OUT,), dtype=jnp.float32) * 0.1
    # module __init__ initializes both scaling parameters to zeros
    scaling_factor = jnp.zeros((C,), dtype=jnp.float32)
    mixture_scaling_factor = jnp.zeros((C, NUM_MIX), dtype=jnp.float32)

    forward = make_armc_forward(w, b, scaling_factor, mixture_scaling_factor)
    z_out, ldj = forward(z)
    jax.block_until_ready((z_out, ldj))

    z_ref, ldj_ref = reference_forward(z, w, b, scaling_factor, mixture_scaling_factor)
    np.testing.assert_allclose(np.asarray(z_out), np.asarray(z_ref), rtol=5e-3, atol=5e-3)
    np.testing.assert_allclose(np.asarray(ldj), np.asarray(ldj_ref), rtol=5e-3, atol=5e-3)
    assert z_out.shape == (B, T, C) and ldj.shape == (B,)
    assert not bool(jnp.any(jnp.isnan(z_out))) and not bool(jnp.any(jnp.isnan(ldj)))

    print("KERNEL_OK")
</pallas_src>

<mosaic_0001>
module attributes {stable_mosaic.version = 11 : i64} {
  func.func @_armc_kernel(%arg0: memref<1x128xf32, #tpu.memory_space<vmem>>, %arg1: memref<54x20xf32, #tpu.memory_space<vmem>>, %arg2: memref<1x128xf32, #tpu.memory_space<vmem>>, %arg3: memref<1x128xf32, #tpu.memory_space<vmem>>) attributes {dimension_semantics = [], scalar_prefetch = 0 : i64, scratch_operands = 0 : i64, tpu.core_type = #tpu.core_type<tc>} {
    %c0 = arith.constant 0 : index
    %c0_0 = arith.constant 0 : index
    %0 = vector.load %arg0[%c0, %c0_0] : memref<1x128xf32, #tpu.memory_space<vmem>>, vector<1x128xf32>
    %1 = tpu.iota {dimensions = array<i32: 1>} : vector<1x128xi32>
    %c3_i32 = arith.constant 3 : i32
    %2 = vector.broadcast %c3_i32 : i32 to vector<1x128xi32>
    %3 = arith.andi %1, %2 : vector<1x128xi32>
    %c125_i32 = arith.constant 125 : i32
    %4 = tpu.dynamic_rotate %0 by %c125_i32 dim 1 : vector<1x128xf32>, i32 -> vector<1x128xf32>
    %c126_i32 = arith.constant 126 : i32
    %5 = tpu.dynamic_rotate %0 by %c126_i32 dim 1 : vector<1x128xf32>, i32 -> vector<1x128xf32>
    %c127_i32 = arith.constant 127 : i32
    %6 = tpu.dynamic_rotate %0 by %c127_i32 dim 1 : vector<1x128xf32>, i32 -> vector<1x128xf32>
    %c1_i32 = arith.constant 1 : i32
    %7 = tpu.dynamic_rotate %0 by %c1_i32 dim 1 : vector<1x128xf32>, i32 -> vector<1x128xf32>
    %c2_i32 = arith.constant 2 : i32
    %8 = tpu.dynamic_rotate %0 by %c2_i32 dim 1 : vector<1x128xf32>, i32 -> vector<1x128xf32>
    %c3_i32_1 = arith.constant 3 : i32
    %9 = tpu.dynamic_rotate %0 by %c3_i32_1 dim 1 : vector<1x128xf32>, i32 -> vector<1x128xf32>
    %c0_i32 = arith.constant 0 : i32
    %10 = vector.broadcast %c0_i32 : i32 to vector<1x128xi32>
    %11 = arith.cmpi eq, %3, %10 : vector<1x128xi32>
    %cst = arith.constant 0.000000e+00 : f32
    %12 = vector.broadcast %cst : f32 to vector<1x128xf32>
    %13 = arith.select %11, %0, %12 : vector<1x128xi1>, vector<1x128xf32>
    %c1_i32_2 = arith.constant 1 : i32
    %14 = vector.broadcast %c1_i32_2 : i32 to vector<1x128xi32>
    %15 = arith.cmpi eq, %3, %14 : vector<1x128xi32>
    %cst_3 = arith.constant 0.000000e+00 : f32
    %16 = vector.broadcast %cst_3 : f32 to vector<1x128xf32>
    %17 = arith.select %15, %7, %16 : vector<1x128xi1>, vector<1x128xf32>
    %c2_i32_4 = arith.constant 2 : i32
    %18 = vector.broadcast %c2_i32_4 : i32 to vector<1x128xi32>
    %19 = arith.cmpi eq, %3, %18 : vector<1x128xi32>
    %cst_5 = arith.constant 0.000000e+00 : f32
    %20 = vector.broadcast %cst_5 : f32 to vector<1x128xf32>
    %21 = arith.select %19, %8, %20 : vector<1x128xi1>, vector<1x128xf32>
    %c3_i32_6 = arith.constant 3 : i32
    %22 = vector.broadcast %c3_i32_6 : i32 to vector<1x128xi32>
    %23 = arith.cmpi eq, %3, %22 : vector<1x128xi32>
    %cst_7 = arith.constant 0.000000e+00 : f32
    %24 = vector.broadcast %cst_7 : f32 to vector<1x128xf32>
    %25 = arith.select %23, %9, %24 : vector<1x128xi1>, vector<1x128xf32>
    %c0_i32_8 = arith.constant 0 : i32
    %26 = vector.broadcast %c0_i32_8 : i32 to vector<1x128xi32>
    %27 = arith.cmpi eq, %3, %26 : vector<1x128xi32>
    %cst_9 = arith.constant 0.000000e+00 : f32
    %28 = vector.broadcast %cst_9 : f32 to vector<1x128xf32>
    %29 = arith.select %27, %6, %28 : vector<1x128xi1>, vector<1x128xf32>
    %c1_i32_10 = arith.constant 1 : i32
    %30 = vector.broadcast %c1_i32_10 : i32 to vector<1x128xi32>
    %31 = arith.cmpi eq, %3, %30 : vector<1x128xi32>
    %cst_11 = arith.constant 0.000000e+00 : f32
    %32 = vector.broadcast %cst_11 : f32 to vector<1x128xf32>
    %33 = arith.select %31, %0, %32 : vector<1x128xi1>, vector<1x128xf32>
    %c2_i32_12 = arith.constant 2 : i32
    %34 = vector.broadcast %c2_i32_12 : i32 to vector<1x128xi32>
    %35 = arith.cmpi eq, %3, %34 : vector<1x128xi32>
    %cst_13 = arith.constant 0.000000e+00 : f32
    %36 = vector.broadcast %cst_13 : f32 to vector<1x128xf32>
    %37 = arith.select %35, %7, %36 : vector<1x128xi1>, vector<1x128xf32>
    %c3_i32_14 = arith.constant 3 : i32
    %38 = vector.broadcast %c3_i32_14 : i32 to vector<1x128xi32>
    %39 = arith.cmpi eq, %3, %38 : vector<1x128xi32>
    %cst_15 = arith.constant 0.000000e+00 : f32
    %40 = vector.broadcast %cst_15 : f32 to vector<1x128xf32>
    %41 = arith.select %39, %8, %40 : vector<1x128xi1>, vector<1x128xf32>
    %c0_i32_16 = arith.constant 0 : i32
    %42 = vector.broadcast %c0_i32_16 : i32 to vector<1x128xi32>
    %43 = arith.cmpi eq, %3, %42 : vector<1x128xi32>
    %cst_17 = arith.constant 0.000000e+00 : f32
    %44 = vector.broadcast %cst_17 : f32 to vector<1x128xf32>
    %45 = arith.select %43, %5, %44 : vector<1x128xi1>, vector<1x128xf32>
    %c1_i32_18 = arith.constant 1 : i32
    %46 = vector.broadcast %c1_i32_18 : i32 to vector<1x128xi32>
    %47 = arith.cmpi eq, %3, %46 : vector<1x128xi32>
    %cst_19 = arith.constant 0.000000e+00 : f32
    %48 = vector.broadcast %cst_19 : f32 to vector<1x128xf32>
    %49 = arith.select %47, %6, %48 : vector<1x128xi1>, vector<1x128xf32>
    %c2_i32_20 = arith.constant 2 : i32
    %50 = vector.broadcast %c2_i32_20 : i32 to vector<1x128xi32>
    %51 = arith.cmpi eq, %3, %50 : vector<1x128xi32>
    %cst_21 = arith.constant 0.000000e+00 : f32
    %52 = vector.broadcast %cst_21 : f32 to vector<1x128xf32>
    %53 = arith.select %51, %0, %52 : vector<1x128xi1>, vector<1x128xf32>
    %c3_i32_22 = arith.constant 3 : i32
    %54 = vector.broadcast %c3_i32_22 : i32 to vector<1x128xi32>
    %55 = arith.cmpi eq, %3, %54 : vector<1x128xi32>
    %cst_23 = arith.constant 0.000000e+00 : f32
    %56 = vector.broadcast %cst_23 : f32 to vector<1x128xf32>
    %57 = arith.select %55, %7, %56 : vector<1x128xi1>, vector<1x128xf32>
    %c0_i32_24 = arith.constant 0 : i32
    %58 = vector.broadcast %c0_i32_24 : i32 to vector<1x128xi32>
    %59 = arith.cmpi eq, %3, %58 : vector<1x128xi32>
    %cst_25 = arith.constant 0.000000e+00 : f32
    %60 = vector.broadcast %cst_25 : f32 to vector<1x128xf32>
    %61 = arith.select %59, %4, %60 : vector<1x128xi1>, vector<1x128xf32>
    %c1_i32_26 = arith.constant 1 : i32
    %62 = vector.broadcast %c1_i32_26 : i32 to vector<1x128xi32>
    %63 = arith.cmpi eq, %3, %62 : vector<1x128xi32>
    %cst_27 = arith.constant 0.000000e+00 : f32
    %64 = vector.broadcast %cst_27 : f32 to vector<1x128xf32>
    %65 = arith.select %63, %5, %64 : vector<1x128xi1>, vector<1x128xf32>
    %c2_i32_28 = arith.constant 2 : i32
    %66 = vector.broadcast %c2_i32_28 : i32 to vector<1x128xi32>
    %67 = arith.cmpi eq, %3, %66 : vector<1x128xi32>
    %cst_29 = arith.constant 0.000000e+00 : f32
    %68 = vector.broadcast %cst_29 : f32 to vector<1x128xf32>
    %69 = arith.select %67, %6, %68 : vector<1x128xi1>, vector<1x128xf32>
    %c3_i32_30 = arith.constant 3 : i32
    %70 = vector.broadcast %c3_i32_30 : i32 to vector<1x128xi32>
    %71 = arith.cmpi eq, %3, %70 : vector<1x128xi32>
    %cst_31 = arith.constant 0.000000e+00 : f32
    %72 = vector.broadcast %cst_31 : f32 to vector<1x128xf32>
    %73 = arith.select %71, %0, %72 : vector<1x128xi1>, vector<1x128xf32>
    %c0_i32_32 = arith.constant 0 : i32
    %74 = vector.broadcast %c0_i32_32 : i32 to vector<1x128xi32>
    %75 = arith.cmpi eq, %3, %74 : vector<1x128xi32>
    %cst_33 = arith.constant 1.000000e+00 : f32
    %cst_34 = arith.constant 0.000000e+00 : f32
    %76 = vector.broadcast %cst_33 : f32 to vector<1x128xf32>
    %77 = vector.broadcast %cst_34 : f32 to vector<1x128xf32>
    %78 = arith.select %75, %76, %77 : vector<1x128xi1>, vector<1x128xf32>
    %c1_i32_35 = arith.constant 1 : i32
    %79 = vector.broadcast %c1_i32_35 : i32 to vector<1x128xi32>
    %80 = arith.cmpi eq, %3, %79 : vector<1x128xi32>
    %cst_36 = arith.constant 1.000000e+00 : f32
    %cst_37 = arith.constant 0.000000e+00 : f32
    %81 = vector.broadcast %cst_36 : f32 to vector<1x128xf32>
    %82 = vector.broadcast %cst_37 : f32 to vector<1x128xf32>
    %83 = arith.select %80, %81, %82 : vector<1x128xi1>, vector<1x128xf32>
    %c2_i32_38 = arith.constant 2 : i32
    %84 = vector.broadcast %c2_i32_38 : i32 to vector<1x128xi32>
    %85 = arith.cmpi eq, %3, %84 : vector<1x128xi32>
    %cst_39 = arith.constant 1.000000e+00 : f32
    %cst_40 = arith.constant 0.000000e+00 : f32
    %86 = vector.broadcast %cst_39 : f32 to vector<1x128xf32>
    %87 = vector.broadcast %cst_40 : f32 to vector<1x128xf32>
    %88 = arith.select %85, %86, %87 : vector<1x128xi1>, vector<1x128xf32>
    %c3_i32_41 = arith.constant 3 : i32
    %89 = vector.broadcast %c3_i32_41 : i32 to vector<1x128xi32>
    %90 = arith.cmpi eq, %3, %89 : vector<1x128xi32>
    %cst_42 = arith.constant 1.000000e+00 : f32
    %cst_43 = arith.constant 0.000000e+00 : f32
    %91 = vector.broadcast %cst_42 : f32 to vector<1x128xf32>
    %92 = vector.broadcast %cst_43 : f32 to vector<1x128xf32>
    %93 = arith.select %90, %91, %92 : vector<1x128xi1>, vector<1x128xf32>
    %94 = tpu.concatenate %13, %17, %21, %25, %29, %33, %37, %41, %45, %49, %53, %57, %61, %65, %69, %73 in 0 : vector<1x128xf32>, vector<1x128xf32>, vector<1x128xf32>, vector<1x128xf32>, vector<1x128xf32>, vector<1x128xf32>, vector<1x128xf32>, vector<1x128xf32>, vector<1x128xf32>, vector<1x128xf32>, vector<1x128xf32>, vector<1x128xf32>, vector<1x128xf32>, vector<1x128xf32>, vector<1x128xf32>, vector<1x128xf32> -> vector<16x128xf32>
    %95 = tpu.concatenate %78, %83, %88, %93 in 0 : vector<1x128xf32>, vector<1x128xf32>, vector<1x128xf32>, vector<1x128xf32> -> vector<4x128xf32>
    %96 = tpu.concatenate %94, %95 in 0 : vector<16x128xf32>, vector<4x128xf32> -> vector<20x128xf32>
    %c0_44 = arith.constant 0 : index
    %c0_45 = arith.constant 0 : index
    %97 = vector.load %arg1[%c0_44, %c0_45] : memref<54x20xf32, #tpu.memory_space<vmem>>, vector<54x20xf32>
    %cst_46 = arith.constant dense<0.000000e+00> : vector<54x128xf32>
    %98 = tpu.matmul %97, %96, %cst_46 {dimension_numbers = #tpu.dot_dimension_numbers<[1], [0], [0], [1], [0, 0, 1, 1], [], []>} : vector<54x20xf32>, vector<20x128xf32>, vector<54x128xf32> -> vector<54x128xf32>
    %99 = vector.extract_strided_slice %98 {offsets = [0, 0], sizes = [11, 128], strides = [1, 1]} : vector<54x128xf32> to vector<11x128xf32>
    %100 = vector.extract_strided_slice %98 {offsets = [11, 0], sizes = [1, 128], strides = [1, 1]} : vector<54x128xf32> to vector<1x128xf32>
    %101 = vector.extract_strided_slice %98 {offsets = [12, 0], sizes = [10, 128], strides = [1, 1]} : vector<54x128xf32> to vector<10x128xf32>
    %102 = vector.extract_strided_slice %98 {offsets = [22, 0], sizes = [10, 128], strides = [1, 1]} : vector<54x128xf32> to vector<10x128xf32>
    %103 = vector.extract_strided_slice %98 {offsets = [32, 0], sizes = [11, 128], strides = [1, 1]} : vector<54x128xf32> to vector<11x128xf32>
    %104 = vector.extract_strided_slice %98 {offsets = [43, 0], sizes = [11, 128], strides = [1, 1]} : vector<54x128xf32> to vector<11x128xf32>
    %105 = arith.mulf %99, %104 : vector<11x128xf32>
    %106 = math.tanh %105 : vector<11x128xf32>
    %107 = arith.mulf %106, %103 : vector<11x128xf32>
    %108 = vector.extract_strided_slice %107 {offsets = [0, 0], sizes = [1, 128], strides = [1, 1]} : vector<11x128xf32> to vector<1x128xf32>
    %109 = vector.extract_strided_slice %107 {offsets = [1, 0], sizes = [10, 128], strides = [1, 1]} : vector<11x128xf32> to vector<10x128xf32>
    %cst_47 = arith.constant dense<0xFF800000> : vector<128xf32>
    %110 = vector.multi_reduction <maximumf>, %101, %cst_47 [0] : vector<10x128xf32> to vector<128xf32>
    %111 = vector.shape_cast %110 : vector<128xf32> to vector<1x128xf32>
    %cst_48 = arith.constant 0.000000e+00 : f32
    %112 = vector.broadcast %cst_48 : f32 to vector<10x128xf32>
    %113 = arith.subf %112, %109 : vector<10x128xf32>
    %114 = vector.broadcast %111 : vector<1x128xf32> to vector<10x128xf32>
    %115 = arith.subf %101, %114 : vector<10x128xf32>
    %116 = tpu.concatenate %113, %115 in 0 : vector<10x128xf32>, vector<10x128xf32> -> vector<20x128xf32>
    %117 = math.exp %116 : vector<20x128xf32>
    %118 = vector.extract_strided_slice %117 {offsets = [0, 0], sizes = [10, 128], strides = [1, 1]} : vector<20x128xf32> to vector<10x128xf32>
    %119 = vector.extract_strided_slice %117 {offsets = [10, 0], sizes = [10, 128], strides = [1, 1]} : vector<20x128xf32> to vector<10x128xf32>
    %120 = vector.broadcast %0 : vector<1x128xf32> to vector<10x128xf32>
    %121 = arith.subf %120, %102 : vector<10x128xf32>
    %122 = arith.mulf %121, %118 : vector<10x128xf32>
    %cst_49 = arith.constant 5.000000e-01 : f32
    %123 = vector.broadcast %cst_49 : f32 to vector<10x128xf32>
    %124 = arith.mulf %123, %122 : vector<10x128xf32>
    %125 = math.tanh %124 : vector<10x128xf32>
    %cst_50 = arith.constant 5.000000e-01 : f32
    %126 = vector.broadcast %cst_50 : f32 to vector<10x128xf32>
    %127 = arith.mulf %126, %125 : vector<10x128xf32>
    %cst_51 = arith.constant 5.000000e-01 : f32
    %128 = vector.broadcast %cst_51 : f32 to vector<10x128xf32>
    %129 = arith.addf %127, %128 : vector<10x128xf32>
    %cst_52 = arith.constant 1.000000e+00 : f32
    %130 = vector.broadcast %cst_52 : f32 to vector<10x128xf32>
    %131 = arith.subf %130, %129 : vector<10x128xf32>
    %132 = arith.mulf %129, %131 : vector<10x128xf32>
    %133 = arith.mulf %132, %118 : vector<10x128xf32>
    %cst_53 = arith.constant dense<0.000000e+00> : vector<128xf32>
    %134 = vector.multi_reduction <add>, %119, %cst_53 [0] : vector<10x128xf32> to vector<128xf32>
    %135 = vector.shape_cast %134 : vector<128xf32> to vector<1x128xf32>
    %136 = arith.mulf %119, %129 : vector<10x128xf32>
    %cst_54 = arith.constant dense<0.000000e+00> : vector<128xf32>
    %137 = vector.multi_reduction <add>, %136, %cst_54 [0] : vector<10x128xf32> to vector<128xf32>
    %138 = vector.shape_cast %137 : vector<128xf32> to vector<1x128xf32>
    %139 = arith.mulf %119, %133 : vector<10x128xf32>
    %cst_55 = arith.constant dense<0.000000e+00> : vector<128xf32>
    %140 = vector.multi_reduction <add>, %139, %cst_55 [0] : vector<10x128xf32> to vector<128xf32>
    %141 = vector.shape_cast %140 : vector<128xf32> to vector<1x128xf32>
    %142 = tpu.concatenate %138, %141, %135 in 0 : vector<1x128xf32>, vector<1x128xf32>, vector<1x128xf32> -> vector<3x128xf32>
    %143 = math.log %142 : vector<3x128xf32>
    %144 = vector.extract_strided_slice %143 {offsets = [0, 0], sizes = [1, 128], strides = [1, 1]} : vector<3x128xf32> to vector<1x128xf32>
    %145 = vector.extract_strided_slice %143 {offsets = [2, 0], sizes = [1, 128], strides = [1, 1]} : vector<3x128xf32> to vector<1x128xf32>
    %146 = arith.subf %144, %145 : vector<1x128xf32>
    %cst_56 = arith.constant 0.000000e+00 : f32
    %147 = vector.broadcast %cst_56 : f32 to vector<1x128xf32>
    %148 = arith.minimumf %146, %147 : vector<1x128xf32>
    %149 = vector.extract_strided_slice %143 {offsets = [1, 0], sizes = [1, 128], strides = [1, 1]} : vector<3x128xf32> to vector<1x128xf32>
    %150 = vector.extract_strided_slice %143 {offsets = [2, 0], sizes = [1, 128], strides = [1, 1]} : vector<3x128xf32> to vector<1x128xf32>
    %151 = arith.subf %149, %150 : vector<1x128xf32>
    %cst_57 = arith.constant -50.6568718 : f32
    %152 = vector.broadcast %cst_57 : f32 to vector<1x128xf32>
    %153 = arith.maximumf %148, %152 : vector<1x128xf32>
    %154 = math.exp %148 : vector<1x128xf32>
    %cst_58 = arith.constant 1.000000e+00 : f32
    %155 = vector.broadcast %cst_58 : f32 to vector<1x128xf32>
    %156 = arith.subf %155, %154 : vector<1x128xf32>
    %cst_59 = arith.constant 1.000000e-22 : f32
    %157 = vector.broadcast %cst_59 : f32 to vector<1x128xf32>
    %158 = arith.maximumf %156, %157 : vector<1x128xf32>
    %159 = math.log %158 : vector<1x128xf32>
    %160 = arith.subf %153, %159 : vector<1x128xf32>
    %cst_60 = arith.constant 0.000000e+00 : f32
    %161 = vector.broadcast %cst_60 : f32 to vector<1x128xf32>
    %162 = arith.subf %161, %153 : vector<1x128xf32>
    %163 = arith.subf %162, %159 : vector<1x128xf32>
    %164 = arith.addf %160, %100 : vector<1x128xf32>
    %165 = math.exp %108 : vector<1x128xf32>
    %166 = arith.mulf %164, %165 : vector<1x128xf32>
    %c0_61 = arith.constant 0 : index
    %c0_62 = arith.constant 0 : index
    %167 = vector.load %arg2[%c0_61, %c0_62] : memref<1x128xf32, #tpu.memory_space<vmem>>, vector<1x128xf32>
    tpu.vector_store %arg2[%c0_61, %c0_62], %166 {strides = array<i32>} : memref<1x128xf32, #tpu.memory_space<vmem>>, vector<1x128xf32>,
    %168 = arith.addf %108, %163 : vector<1x128xf32>
    %169 = arith.addf %168, %151 : vector<1x128xf32>
    %c0_63 = arith.constant 0 : index
    %c0_64 = arith.constant 0 : index
    %170 = vector.load %arg3[%c0_63, %c0_64] : memref<1x128xf32, #tpu.memory_space<vmem>>, vector<1x128xf32>
    tpu.vector_store %arg3[%c0_63, %c0_64], %169 {strides = array<i32>} : memref<1x128xf32, #tpu.memory_space<vmem>>, vector<1x128xf32>,
    return
  }
}

</mosaic_0001>

<llo_original>
// kernel: forward.1
$region0: #{forward.1}
  #allocation0 [shape = 'u32[]', space=smem, size = 0x4, offset = 0x4, fixed_abs, tag = 'smem constant byte address 0x4 - core index']
  #allocation1 [shape = 'u32[144,128]{1,0:T(1,128)}', space=vmem, size = 0x12000, scoped, tag = 'internal scratch']
  %s0 = inlined_call_operand.vmem [shape: f32[1,128], index: 0, kind: input, shape index: {}]
  %s1 = inlined_call_operand.vmem [shape: f32[54,20], index: 1, kind: input, shape index: {}]
  %s2 = inlined_call_operand.vmem [shape: f32[1,128], index: 2, kind: output, shape index: {0}]
  %s3 = inlined_call_operand.vmem [shape: f32[1,128], index: 3, kind: output, shape index: {1}]
  %4 = xla_tuple %s2, %s3
  %s5 = sld [smem:[#allocation0]]
  $region26: #{forward.1} parent=0
    _
  %s7 = ssub.s32 1, %s5
  %s8 = scalar_select 0, %s7, %s5
  // Predicated region
  $region2: #{forward.1} parent=0 // pred_check
    _
  $region3: #{forward.1} parent=0 // pred_check_branch
    %10 = sbr.rel (0) target = $region5
  $region4: #{forward.1} parent=0 // pred_region
    _
  $region5: #{forward.1} parent=0 // pred_fallthru
    _
  // Predicated region
  $region6: #{forward.1} parent=0 // pred_check
    _
  $region7: #{forward.1} parent=0 // pred_check_branch
    %12 = sbr.rel (0) target = $region9
  $region8: #{forward.1} parent=0 // pred_region
    _
  $region9: #{forward.1} parent=0 // pred_fallthru
    _
  %v13 = vld [vmem:[%s0] sm:$0x1]
  %v14 = vlaneseq
  %v15 = vand.u32 %v14, 127
  %v16 = vand.u32 %v15, 3
  %17 = vrot.lane.b32.xlu0 %v13, 125
  %v18 = vpop.permute.xlu0 %17
  %19 = vrot.lane.b32.xlu0 %v13, 126
  %v20 = vpop.permute.xlu0 %19
  %21 = vrot.lane.b32.xlu0 %v13, 127
  %v22 = vpop.permute.xlu0 %21
  %23 = vrot.lane.b32.xlu0 %v13, 1
  %v24 = vpop.permute.xlu0 %23
  %25 = vrot.lane.b32.xlu0 %v13, 2
  %v26 = vpop.permute.xlu0 %25
  %27 = vrot.lane.b32.xlu0 %v13, 3
  %v28 = vpop.permute.xlu0 %27
  %vm29 = vcmp.eq.s32.totalorder %v16, 0
  %v30 = vsel %vm29, %v13, 0.0
  %vm31 = vcmp.eq.s32.totalorder %v16, 1
  %v32 = vsel %vm31, %v24, 0.0
  %vm33 = vcmp.eq.s32.totalorder %v16, 2
  %v34 = vsel %vm33, %v26, 0.0
  %vm35 = vcmp.eq.s32.totalorder %v16, 3
  %v36 = vsel %vm35, %v28, 0.0
  %v37 = vsel %vm29, %v22, 0.0
  %v38 = vsel %vm31, %v13, 0.0
  %v39 = vsel %vm33, %v24, 0.0
  %v40 = vsel %vm35, %v26, 0.0
  %v41 = vsel %vm29, %v20, 0.0
  %v42 = vsel %vm31, %v22, 0.0
  %v43 = vsel %vm33, %v13, 0.0
  %v44 = vsel %vm35, %v24, 0.0
  %v45 = vsel %vm29, %v18, 0.0
  %v46 = vsel %vm31, %v20, 0.0
  %v47 = vsel %vm33, %v22, 0.0
  %v48 = vsel %vm35, %v13, 0.0
  %v49 = vsel %vm29, 1.0, 0.0
  %v50 = vsel %vm31, 1.0, 0.0
  %v51 = vsel %vm33, 1.0, 0.0
  %v52 = vsel %vm35, 1.0, 0.0
  %v54 = vrot.slane %v32, 7
  %v57 = vrot.slane %v34, 6
  %v60 = vrot.slane %v36, 5
  %v63 = vrot.slane %v37, 4
  %v66 = vrot.slane %v38, 3
  %v69 = vrot.slane %v39, 2
  %v72 = vrot.slane %v40, 1
  %v75 = vrot.slane %v42, 7
  %v78 = vrot.slane %v43, 6
  %v81 = vrot.slane %v44, 5
  %v84 = vrot.slane %v45, 4
  %v87 = vrot.slane %v46, 3
  %v90 = vrot.slane %v47, 2
  %v93 = vrot.slane %v48, 1
  %vm95 = vcmask 1040384
  %v96 = vsel %vm95, %v30, %v54
  %vm97 = vcmask 1041408
  %v98 = vsel %vm97, %v96, %v57
  %vm99 = vcmask 1042432
  %v100 = vsel %vm99, %v98, %v60
  %vm101 = vcmask 1043456
  %v102 = vsel %vm101, %v100, %v63
  %vm103 = vcmask 1044480
  %v104 = vsel %vm103, %v102, %v66
  %vm105 = vcmask 1045504
  %v106 = vsel %vm105, %v104, %v69
  %vm107 = vcmask 1046528
  %v108 = vsel %vm107, %v106, %v72
  %v109 = vsel %vm95, %v41, %v75
  %v110 = vsel %vm97, %v109, %v78
  %v111 = vsel %vm99, %v110, %v81
  %v112 = vsel %vm101, %v111, %v84
  %v113 = vsel %vm103, %v112, %v87
  %v114 = vsel %vm105, %v113, %v90
  %v115 = vsel %vm107, %v114, %v93
  %v116 = vsel %vm95, %v49, %v50
  %v117 = vsel %vm97, %v116, %v51
  %v118 = vsel %vm99, %v117, %v52
  %v119 = vld [vmem:[%s1] sm:$0xff]
  %v120 = vld [vmem:[%s1 + $0x8] sm:$0xff]
  %v121 = vld [vmem:[%s1 + $0x10] sm:$0xff]
  %v122 = vld [vmem:[%s1 + $0x18] sm:$0xff]
  %v123 = vld [vmem:[%s1 + $0x20] sm:$0xff]
  %v124 = vld [vmem:[%s1 + $0x28] sm:$0xff]
  %v125 = vld [vmem:[%s1 + $0x30] sm:$0x3f]
  %vm126 = vcmask 162816
  %v128 = vsel %vm126, %v119, 0
  %v131 = vsel %vm126, %v120, 0
  %v134 = vsel %vm126, %v121, 0
  %v137 = vsel %vm126, %v122, 0
  %v140 = vsel %vm126, %v123, 0
  %v143 = vsel %vm126, %v124, 0
  %v146 = vsel %vm126, %v125, 0
  %v149 = vsel %vm101, %v118, 0
  %151 = vmatprep.subr.mxu0 0.0
  %152 = vmatpush1.msra.mxu0 %v108
  %153 = vmatprep.subr.mxu0 0.0
  %154 = vmatpush1.msra.mxu0 %v115
  %155 = vmatprep.subr.mxu0 0.0
  %156 = vmatpush1.msra.mxu0 %v149
  %157 = vmatprep.subr.mxu0 0.0
  %158 = vmatpush1.msra.mxu0 0.0
  %159 = vmatprep.subr.mxu0 0.0
  %160 = vmatpush1.msra.mxu0 0.0
  %161 = vmatprep.subr.mxu0 0.0
  %162 = vmatpush1.msra.mxu0 0.0
  %163 = vmatprep.subr.mxu0 0.0
  %164 = vmatpush1.msra.mxu0 0.0
  %165 = vmatprep.subr.mxu0 0.0
  %166 = vmatpush1.msra.mxu0 0.0
  %167 = vmatprep.subr.mxu0 0.0
  %168 = vmatpush1.msra.mxu0 0.0
  %169 = vmatprep.subr.mxu0 0.0
  %170 = vmatpush1.msra.mxu0 0.0
  %171 = vmatprep.subr.mxu0 0.0
  %172 = vmatpush1.msra.mxu0 0.0
  %173 = vmatprep.subr.mxu0 0.0
  %174 = vmatpush1.msra.mxu0 0.0
  %175 = vmatprep.subr.mxu0 0.0
  %176 = vmatpush1.msra.mxu0 0.0
  %177 = vmatprep.subr.mxu0 0.0
  %178 = vmatpush1.msra.mxu0 0.0
  %179 = vmatprep.subr.mxu0 0.0
  %180 = vmatpush1.msra.mxu0 0.0
  %181 = vmatprep.subr.mxu0 0.0
  %182 = vmatpush1.msra.mxu0 0.0
  %183 = vmatprep.subr.mxu0 0.0
  %184 = vmatpush1.msra.mxu0 0.0
  %185 = vmatprep.subr.mxu0 0.0
  %186 = vmatpush1.msra.mxu0 0.0
  %187 = vmatprep.subr.mxu0 0.0
  %188 = vmatpush1.msra.mxu0 0.0
  %189 = vmatprep.subr.mxu0 0.0
  %190 = vmatpush1.msra.mxu0 0.0
  %191 = vmatprep.subr.mxu0 0.0
  %192 = vmatpush1.msra.mxu0 0.0
  %193 = vmatprep.subr.mxu0 0.0
  %194 = vmatpush1.msra.mxu0 0.0
  %195 = vmatprep.subr.mxu0 0.0
  %196 = vmatpush1.msra.mxu0 0.0
  %197 = vmatprep.subr.mxu0 0.0
  %198 = vmatpush1.msra.mxu0 0.0
  %199 = vmatprep.subr.mxu0 0.0
  %200 = vmatpush1.msra.mxu0 0.0
  %201 = vmatprep.subr.mxu0 0.0
  %202 = vmatpush1.msra.mxu0 0.0
  %203 = vmatprep.subr.mxu0 0.0
  %204 = vmatpush1.msra.mxu0 0.0
  %205 = vmatprep.subr.mxu0 0.0
  %206 = vmatpush1.msra.mxu0 0.0
  %207 = vmatprep.subr.mxu0 0.0
  %208 = vmatpush1.msra.mxu0 0.0
  %209 = vmatprep.subr.mxu0 0.0
  %210 = vmatpush1.msra.mxu0 0.0
  %211 = vmatprep.subr.mxu0 0.0
  %212 = vmatpush1.msra.mxu0 0.0
  %213 = vmatprep.subr.mxu0 0.0
  %214 = vmatpush1.msra.mxu0 0.0
  %215 = vmatprep.mubr.f32.mxu0 0.0
  %216 = vmatmul.mubr.f32.gmra.mrb[0].mxu0 %v128
  %v217 = vpop.f32.mrb[0].mxu0
  %v218 = vadd.f32 0.0, %v217
  %v219 = vpop.f32.mrb[0].mxu0
  %220 = vmatprep.mubr.f32.mxu0 0.0
  %221 = vmatmul.mubr.f32.gmra.mrb[0].mxu0 %v131
  %v222 = vpop.f32.mrb[0].mxu0
  %v223 = vadd.f32 0.0, %v222
  %v224 = vpop.f32.mrb[0].mxu0
  %225 = vmatprep.mubr.f32.mxu0 0.0
  %226 = vmatmul.mubr.f32.gmra.mrb[0].mxu0 %v134
  %v227 = vpop.f32.mrb[0].mxu0
  %v228 = vadd.f32 0.0, %v227
  %v229 = vpop.f32.mrb[0].mxu0
  %230 = vmatprep.mubr.f32.mxu0 0.0
  %231 = vmatmul.mubr.f32.gmra.mrb[0].mxu0 %v137
  %v232 = vpop.f32.mrb[0].mxu0
  %v233 = vadd.f32 0.0, %v232
  %v234 = vpop.f32.mrb[0].mxu0
  %235 = vmatprep.mubr.f32.mxu0 0.0
  %236 = vmatmul.mubr.f32.gmra.mrb[0].mxu0 %v140
  %v237 = vpop.f32.mrb[0].mxu0
  %v238 = vadd.f32 0.0, %v237
  %v239 = vpop.f32.mrb[0].mxu0
  %240 = vmatprep.mubr.f32.mxu0 0.0
  %241 = vmatmul.mubr.f32.gmra.mrb[0].mxu0 %v143
  %v242 = vpop.f32.mrb[0].mxu0
  %v243 = vadd.f32 0.0, %v242
  %v244 = vpop.f32.mrb[0].mxu0
  %245 = vmatprep.mubr.f32.mxu0 0.0
  %246 = vmatmul.mubr.f32.gmra.mrb[0].mxu0 %v146
  %v247 = vpop.f32.mrb[0].mxu0
  %v248 = vadd.f32 0.0, %v247
  %v249 = vpop.f32.mrb[0].mxu0
  %250 = vdwg.mxu0
  %v253 = vrot.slane %v243, 3
  %v254 = vrot.slane %v248, 3
  %v255 = vsel %vm103, %v253, %v254
  %v258 = vmul.f32 %v218, %v255
  %v259 = vmul.f32 %v223, %v254
  %v260 = vtanh.pop %v258
  %v261 = vtanh.pop %v259
  %v262 = vmul.f32 %v260, %v238
  %v263 = vmul.f32 %v261, %v243
  %vm264 = vcmask 1047556
  %v265 = vsel %vm264, %v223, -inf
  %v266 = vsel %vm105, %v228, -inf
  %v267 = vmax.f32 %v265, %v266
  %v268 = vrot.slane %v267, 4
  %v269 = vmax.f32 %v267, %v268
  %v270 = vrot.slane %v269, 2
  %v271 = vmax.f32 %v269, %v270
  %v272 = vrot.slane %v271, 1
  %v273 = vmax.f32 %v271, %v272
  %v274 = vsub.f32 0.0, %v262
  %v275 = vsub.f32 0.0, %v263
  %v276 = vsub.f32 %v223, %v273
  %v277 = vsub.f32 %v228, %v273
  %v280 = vrot.slane %v274, 1
  %v281 = vrot.slane %v275, 1
  %v282 = vsel %vm107, %v280, %v281
  %v287 = vrot.slane %v276, 2
  %v288 = vrot.slane %v277, 2
  %v289 = vsel %vm105, %v287, %v288
  %v292 = vsel %vm97, %v281, %v289
  %v293 = vmul.f32 %v282, 1.442695
  %v294 = vpow.pop %v293
  %v295 = vmul.f32 %v292, 1.442695
  %v296 = vpow.pop %v295
  %v297 = vmul.f32 %v288, 1.442695
  %v298 = vpow.pop %v297
  %v300 = vlaneseq
  %v301 = vshrl.u32 %v300, 7
  %v302 = vsub.s32 0, %v301
  %v303 = vrot.slane %v13, %v302
  %v305 = vsub.f32 %v303, %v228
  %v306 = vsub.f32 %v303, %v233
  %v309 = vrot.slane %v294, 2
  %v310 = vrot.slane %v296, 2
  %v311 = vsel %vm105, %v309, %v310
  %v314 = vmul.f32 %v305, %v309
  %v315 = vmul.f32 %v306, %v311
  %v316 = vmul.f32 %v314, 0.5
  %v317 = vmul.f32 %v315, 0.5
  %v318 = vtanh.pop %v316
  %v319 = vtanh.pop %v317
  %v320 = vmul.f32 %v318, 0.5
  %v321 = vmul.f32 %v319, 0.5
  %v322 = vadd.f32 %v320, 0.5
  %v323 = vadd.f32 %v321, 0.5
  %v324 = vsub.f32 1.0, %v322
  %v325 = vsub.f32 1.0, %v323
  %v326 = vmul.f32 %v322, %v324
  %v327 = vmul.f32 %v323, %v325
  %v328 = vmul.f32 %v326, %v309
  %v329 = vmul.f32 %v327, %v311
  %v331 = vrot.slane %v298, 2
  %v332 = vsel %vm105, %v310, %v331
  %v335 = vsel %vm97, %v331, 0.0
  %v336 = vadd.f32 %v332, %v335
  %v337 = vrot.slane %v336, 4
  %v338 = vadd.f32 %v336, %v337
  %v339 = vrot.slane %v338, 2
  %v340 = vadd.f32 %v338, %v339
  %v341 = vrot.slane %v340, 1
  %v342 = vadd.f32 %v340, %v341
  %v345 = vrot.slane %v322, 4
  %v346 = vrot.slane %v323, 4
  %v347 = vsel %vm101, %v345, %v346
  %v350 = vmul.f32 %v296, %v347
  %v351 = vmul.f32 %v298, %v346
  %v354 = vrot.slane %v350, 2
  %v355 = vrot.slane %v351, 2
  %v356 = vsel %vm105, %v354, %v355
  %v359 = vsel %vm97, %v355, 0.0
  %v360 = vadd.f32 %v356, %v359
  %v361 = vrot.slane %v360, 4
  %v362 = vadd.f32 %v360, %v361
  %v363 = vrot.slane %v362, 2
  %v364 = vadd.f32 %v362, %v363
  %v365 = vrot.slane %v364, 1
  %v366 = vadd.f32 %v364, %v365
  %v369 = vrot.slane %v328, 4
  %v370 = vrot.slane %v329, 4
  %v371 = vsel %vm101, %v369, %v370
  %v374 = vmul.f32 %v296, %v371
  %v375 = vmul.f32 %v298, %v370
  %v378 = vrot.slane %v374, 2
  %v379 = vrot.slane %v375, 2
  %v380 = vsel %vm105, %v378, %v379
  %v383 = vsel %vm97, %v379, 0.0
  %v384 = vadd.f32 %v380, %v383
  %v385 = vrot.slane %v384, 4
  %v386 = vadd.f32 %v384, %v385
  %v387 = vrot.slane %v386, 2
  %v388 = vadd.f32 %v386, %v387
  %v389 = vrot.slane %v388, 1
  %v390 = vadd.f32 %v388, %v389
  %v391 = vsel %vm95, %v366, %v390
  %v392 = vsel %vm97, %v391, %v342
  %v393 = vlog2.pop %v392
  %v394 = vmul.f32 %v393, 0.6931472
  %v396 = vrot.slane %v394, 2
  %v398 = vsub.f32 %v394, %v396
  %v399 = vmin.f32 %v398, 0.0
  %v400 = vrot.slane %v394, 1
  %v402 = vsub.f32 %v394, %v400
  %v403 = vmax.f32 %v399, -50.65687
  %v404 = vmul.f32 %v399, 1.442695
  %v405 = vpow.pop %v404
  %v406 = vsub.f32 1.0, %v405
  %v407 = vmax.f32 %v406, 1e-22
  %v408 = vlog2.pop %v407
  %v409 = vmul.f32 %v408, 0.6931472
  %v410 = vsub.f32 %v403, %v409
  %v411 = vsub.f32 0.0, %v403
  %v412 = vsub.f32 %v411, %v409
  %v414 = vrot.slane %v223, 3
  %v416 = vadd.f32 %v410, %v414
  %v417 = vmul.f32 %v262, 1.442695
  %v418 = vpow.pop %v417
  %v419 = vmul.f32 %v416, %v418
  %420 = vst [vmem:[%s2] sm:$0x1] %v419
  %v421 = vadd.f32 %v262, %v412
  %v423 = vrot.slane %v402, 1
  %v425 = vadd.f32 %v421, %v423
  %426 = vst [vmem:[%s3] sm:$0x1] %v425
  // Predicated region
  $region10: #{forward.1} parent=0 // pred_check
    _
  $region11: #{forward.1} parent=0 // pred_check_branch
    %428 = sbr.rel (0) target = $region13
  $region12: #{forward.1} parent=0 // pred_region
    _
  $region13: #{forward.1} parent=0 // pred_fallthru
    _
  // Predicated region
  $region14: #{forward.1} parent=0 // pred_check
    _
  $region15: #{forward.1} parent=0 // pred_check_branch
    %430 = sbr.rel (0) target = $region17
  $region16: #{forward.1} parent=0 // pred_region
    _
  $region17: #{forward.1} parent=0 // pred_fallthru
    _
  // Predicated region
  $region18: #{forward.1} parent=0 // pred_check
    _
  $region19: #{forward.1} parent=0 // pred_check_branch
    %432 = sbr.rel (0) target = $region21
  $region20: #{forward.1} parent=0 // pred_region
    _
  $region21: #{forward.1} parent=0 // pred_fallthru
    _
  // Predicated region
  $region22: #{forward.1} parent=0 // pred_check
    _
  $region23: #{forward.1} parent=0 // pred_check_branch
    %434 = sbr.rel (0) target = $region25
  $region24: #{forward.1} parent=0 // pred_region
    _
  $region25: #{forward.1} parent=0 // pred_fallthru
    _

</llo_original>
